<compile_context>
chip_gen: v6e
topology: v6e:2x2x1
jax: 0.10.0
libtpu: 0.0.40
codegen_flags: <defaults>
</compile_context>

<pallas_src>
import jax
import jax.numpy as jnp
from jax.experimental import pallas as pl
from jax.experimental.pallas import tpu as pltpu


def _conv_relu_kernel(x_ref, w_ref, b_ref, o_ref):
    # x_ref: (1, H+2, W*Cin)   one image, rows zero-padded along H (halo rows)
    # w_ref: (3, W*Cin, W*Cout) kw-banded weights (one band per kh tap)
    # b_ref: (1, W*Cout)        bias tiled across W (lane dense)
    # o_ref: (1, H, W*Cout)     lane-dense output slab
    H = o_ref.shape[1]

    # 3x3 conv == 3 row-shifted matmuls against kw-banded weight matrices.
    # Slices are along H only (full padded width), accumulation in f32.
    acc = jnp.dot(x_ref[0, 0:H, :], w_ref[0],
                  preferred_element_type=jnp.float32)
    acc = acc + jnp.dot(x_ref[0, 1:H + 1, :], w_ref[1],
                        preferred_element_type=jnp.float32)
    acc = acc + jnp.dot(x_ref[0, 2:H + 2, :], w_ref[2],
                        preferred_element_type=jnp.float32)

    acc = acc + b_ref[...]                 # (1, W*Cout) broadcast over H rows
    acc = jnp.maximum(acc, 0.0)            # ReLU
    o_ref[...] = acc.reshape(o_ref.shape).astype(o_ref.dtype)


def _banded_weights(weight, W):
    """(Cout, Cin, 3, 3) OIHW -> (3, W*Cin, W*Cout) kw-banded matrices.

    band[kh][w*Cin + c, j*Cout + o] = weight[o, c, kh, w - j + 1]
    for w - j + 1 in {0, 1, 2}, else 0.  Out-of-range columns are simply
    absent, which reproduces the padding=1 zero padding along W.
    """
    Cout, Cin, KH, KW = weight.shape
    wt = jnp.transpose(weight, (2, 3, 1, 0))            # (KH, KW, Cin, Cout)
    bands = []
    for kh in range(KH):
        b = jnp.zeros((W * Cin, W * Cout), weight.dtype)
        for kw in range(KW):
            # shift[w, j] = 1 iff w == j + kw - 1
            shift = jnp.eye(W, W, k=1 - kw, dtype=weight.dtype)
            b = b + jnp.kron(shift, wt[kh, kw])
        bands.append(b)
    return jnp.stack(bands, axis=0)                     # (3, W*Cin, W*Cout)


@jax.jit
def conv_relu_pallas(x_nchw, weight, bias):
    """x_nchw: (N, Cin, H, W); weight: (Cout, Cin, 3, 3); bias: (Cout,)."""
    N, Cin, H, W = x_nchw.shape
    Cout = weight.shape[0]
    WC_in, WC_out = W * Cin, W * Cout

    # NCHW -> per-row lane layout (N, H, W*Cin); zero-pad only H (halo rows).
    # Horizontal padding is folded into the banded weights.
    x_rows = jnp.transpose(x_nchw, (0, 2, 3, 1)).reshape(N, H, WC_in)
    x_rows = jnp.pad(x_rows, ((0, 0), (1, 1), (0, 0)))

    w_band = _banded_weights(weight, W)                 # (3, W*Cin, W*Cout)
    b_row = jnp.tile(bias, W).reshape(1, WC_out)        # lane-dense bias row

    out_rows = pl.pallas_call(
        _conv_relu_kernel,
        out_shape=jax.ShapeDtypeStruct((N, H, WC_out), x_nchw.dtype),
        grid_spec=pltpu.PrefetchScalarGridSpec(
            num_scalar_prefetch=0,
            grid=(N,),
            in_specs=[
                pl.BlockSpec((1, H + 2, WC_in), lambda n: (n, 0, 0)),
                pl.BlockSpec((3, WC_in, WC_out), lambda n: (0, 0, 0)),
                pl.BlockSpec((1, WC_out), lambda n: (0, 0)),
            ],
            out_specs=pl.BlockSpec((1, H, WC_out), lambda n: (n, 0, 0)),
        ),
        compiler_params=pltpu.CompilerParams(
            dimension_semantics=("parallel",),
            vmem_limit_bytes=32 * 1024 * 1024,
        ),
    )(x_rows, w_band, b_row)

    # (N, H, W*Cout) -> (N, H, W, Cout) -> NCHW to match the PyTorch module.
    return jnp.transpose(out_rows.reshape(N, H, W, Cout), (0, 3, 1, 2))


if __name__ == "__main__":
    key = jax.random.PRNGKey(0)
    k_x, k_w, k_b = jax.random.split(key, 3)

    N, Cin, Cout, H, W = 2, 4, 8, 16, 16
    x = jax.random.normal(k_x, (N, Cin, H, W), dtype=jnp.float32)
    # Deterministic synthetic parameters (PyTorch-like uniform init range).
    fan_in = Cin * 3 * 3
    bound = 1.0 / (fan_in ** 0.5)
    weight = jax.random.uniform(k_w, (Cout, Cin, 3, 3),
                                minval=-bound, maxval=bound,
                                dtype=jnp.float32)
    bias = jax.random.uniform(k_b, (Cout,), minval=-bound, maxval=bound,
                              dtype=jnp.float32)

    out = conv_relu_pallas(x, weight, bias)
    out = jax.block_until_ready(out)

    # Sanity check against the XLA reference conv (same semantics as PyTorch).
    ref = jax.lax.conv_general_dilated(
        x, weight, window_strides=(1, 1), padding=((1, 1), (1, 1)),
        dimension_numbers=("NCHW", "OIHW", "NCHW"))
    ref = jnp.maximum(ref + bias[None, :, None, None], 0.0)
    assert out.shape == (N, Cout, H, W)
    assert jnp.allclose(out, ref, atol=1e-3, rtol=1e-3)

    print("KERNEL_OK")
</pallas_src>

<mosaic_0001>
module attributes {stable_mosaic.version = 11 : i64} {
  func.func @_conv_relu_kernel(%arg0: i32, %arg1: memref<1x18x64xf32, #tpu.memory_space<vmem>>, %arg2: memref<3x64x128xf32, #tpu.memory_space<vmem>>, %arg3: memref<1x128xf32, #tpu.memory_space<vmem>>, %arg4: memref<1x16x128xf32, #tpu.memory_space<vmem>>) attributes {dimension_semantics = [#tpu.dimension_semantics<parallel>], iteration_bounds = array<i64: 2>, scalar_prefetch = 0 : i64, scratch_operands = 0 : i64, tpu.core_type = #tpu.core_type<tc>, window_params = [{transform_indices = @transform_0, window_bounds = array<i64: 1, 18, 64>}, {pipeline_mode = #tpu.pipeline_mode<synchronous>, transform_indices = @transform_1, window_bounds = array<i64: 3, 64, 128>}, {pipeline_mode = #tpu.pipeline_mode<synchronous>, transform_indices = @transform_2, window_bounds = array<i64: 1, 128>}, {transform_indices = @transform_3, window_bounds = array<i64: 1, 16, 128>}]} {
    %c0 = arith.constant 0 : index
    %c0_0 = arith.constant 0 : index
    %c0_1 = arith.constant 0 : index
    %0 = vector.load %arg1[%c0, %c0_0, %c0_1] : memref<1x18x64xf32, #tpu.memory_space<vmem>>, vector<1x16x64xf32>
    %1 = vector.shape_cast %0 : vector<1x16x64xf32> to vector<16x64xf32>
    %c0_2 = arith.constant 0 : index
    %c0_3 = arith.constant 0 : index
    %c0_4 = arith.constant 0 : index
    %2 = vector.load %arg2[%c0_2, %c0_3, %c0_4] : memref<3x64x128xf32, #tpu.memory_space<vmem>>, vector<1x64x128xf32>
    %3 = vector.shape_cast %2 : vector<1x64x128xf32> to vector<64x128xf32>
    %cst = arith.constant dense<0.000000e+00> : vector<16x128xf32>
    %4 = tpu.matmul %1, %3, %cst {dimension_numbers = #tpu.dot_dimension_numbers<[1], [0], [0], [1], [0, 0, 1, 1], [], []>} : vector<16x64xf32>, vector<64x128xf32>, vector<16x128xf32> -> vector<16x128xf32>
    %c0_5 = arith.constant 0 : index
    %c1 = arith.constant 1 : index
    %c0_6 = arith.constant 0 : index
    %5 = vector.load %arg1[%c0_5, %c1, %c0_6] : memref<1x18x64xf32, #tpu.memory_space<vmem>>, vector<1x16x64xf32>
    %6 = vector.shape_cast %5 : vector<1x16x64xf32> to vector<16x64xf32>
    %c1_7 = arith.constant 1 : index
    %c0_8 = arith.constant 0 : index
    %c0_9 = arith.constant 0 : index
    %7 = vector.load %arg2[%c1_7, %c0_8, %c0_9] : memref<3x64x128xf32, #tpu.memory_space<vmem>>, vector<1x64x128xf32>
    %8 = vector.shape_cast %7 : vector<1x64x128xf32> to vector<64x128xf32>
    %cst_10 = arith.constant dense<0.000000e+00> : vector<16x128xf32>
    %9 = tpu.matmul %6, %8, %cst_10 {dimension_numbers = #tpu.dot_dimension_numbers<[1], [0], [0], [1], [0, 0, 1, 1], [], []>} : vector<16x64xf32>, vector<64x128xf32>, vector<16x128xf32> -> vector<16x128xf32>
    %10 = arith.addf %4, %9 : vector<16x128xf32>
    %c0_11 = arith.constant 0 : index
    %c2 = arith.constant 2 : index
    %c0_12 = arith.constant 0 : index
    %11 = vector.load %arg1[%c0_11, %c2, %c0_12] : memref<1x18x64xf32, #tpu.memory_space<vmem>>, vector<1x16x64xf32>
    %12 = vector.shape_cast %11 : vector<1x16x64xf32> to vector<16x64xf32>
    %c2_13 = arith.constant 2 : index
    %c0_14 = arith.constant 0 : index
    %c0_15 = arith.constant 0 : index
    %13 = vector.load %arg2[%c2_13, %c0_14, %c0_15] : memref<3x64x128xf32, #tpu.memory_space<vmem>>, vector<1x64x128xf32>
    %14 = vector.shape_cast %13 : vector<1x64x128xf32> to vector<64x128xf32>
    %cst_16 = arith.constant dense<0.000000e+00> : vector<16x128xf32>
    %15 = tpu.matmul %12, %14, %cst_16 {dimension_numbers = #tpu.dot_dimension_numbers<[1], [0], [0], [1], [0, 0, 1, 1], [], []>} : vector<16x64xf32>, vector<64x128xf32>, vector<16x128xf32> -> vector<16x128xf32>
    %16 = arith.addf %10, %15 : vector<16x128xf32>
    %c0_17 = arith.constant 0 : index
    %c0_18 = arith.constant 0 : index
    %17 = vector.load %arg3[%c0_17, %c0_18] : memref<1x128xf32, #tpu.memory_space<vmem>>, vector<1x128xf32>
    %18 = vector.broadcast %17 : vector<1x128xf32> to vector<16x128xf32>
    %19 = arith.addf %16, %18 : vector<16x128xf32>
    %cst_19 = arith.constant 0.000000e+00 : f32
    %20 = vector.broadcast %cst_19 : f32 to vector<16x128xf32>
    %21 = arith.maximumf %19, %20 : vector<16x128xf32>
    %22 = vector.shape_cast %21 : vector<16x128xf32> to vector<1x16x128xf32>
    %c0_20 = arith.constant 0 : index
    %c0_21 = arith.constant 0 : index
    %c0_22 = arith.constant 0 : index
    %23 = vector.load %arg4[%c0_20, %c0_21, %c0_22] : memref<1x16x128xf32, #tpu.memory_space<vmem>>, vector<1x16x128xf32>
    tpu.vector_store %arg4[%c0_20, %c0_21, %c0_22], %22 {strides = array<i32>} : memref<1x16x128xf32, #tpu.memory_space<vmem>>, vector<1x16x128xf32>,
    return
  }
  func.func @transform_0(%arg0: i32) -> (i32, i32, i32) {
    %c0_i32 = arith.constant 0 : i32
    %c0_i32_0 = arith.constant 0 : i32
    %c0_i32_1 = arith.constant 0 : i32
    return %arg0, %c0_i32, %c0_i32_0 : i32, i32, i32
  }
  func.func @transform_1(%arg0: i32) -> (i32, i32, i32) {
    %c0_i32 = arith.constant 0 : i32
    %c0_i32_0 = arith.constant 0 : i32
    %c0_i32_1 = arith.constant 0 : i32
    %c0_i32_2 = arith.constant 0 : i32
    return %c0_i32, %c0_i32_0, %c0_i32_1 : i32, i32, i32
  }
  func.func @transform_2(%arg0: i32) -> (i32, i32) {
    %c0_i32 = arith.constant 0 : i32
    %c0_i32_0 = arith.constant 0 : i32
    %c0_i32_1 = arith.constant 0 : i32
    return %c0_i32, %c0_i32_0 : i32, i32
  }
  func.func @transform_3(%arg0: i32) -> (i32, i32, i32) {
    %c0_i32 = arith.constant 0 : i32
    %c0_i32_0 = arith.constant 0 : i32
    %c0_i32_1 = arith.constant 0 : i32
    return %arg0, %c0_i32, %c0_i32_0 : i32, i32, i32
  }
}

</mosaic_0001>

<llo_original>
// kernel: tile.8
$region0: #{tile.8}
  #allocation0 [shape = 's32[1]{0}', space=sflag, size = 0x4, scoped, tag = 'scoped memory for tile.8']
  %s0 = inlined_call_operand.vmem [shape: f32[8], index: 0, kind: input, shape index: {}]
  %s1 = inlined_call_operand.vmem [shape: f32[16,8], index: 1, kind: output, shape index: {}]
  // Predicated region
  $region2: #{tile.8} parent=0 // pred_check
    _
  $region3: #{tile.8} parent=0 // pred_check_branch
    %3 = sbr.rel (0) target = $region5
  $region4: #{tile.8} parent=0 // pred_region
    _
  $region5: #{tile.8} parent=0 // pred_fallthru
    _
  %v4 = vld [vmem:[%s0] ss:$0 sm:$0xff]
  %5 = vst [vmem:[%s1] sm:$0xff] %v4
  %s6 = scalar_lea.vmem %s1, 8
  %7 = vst [vmem:[%s6] sm:$0xff] %v4

// kernel: tile.9
$region0: #{tile.9}
  %s0 = inlined_call_operand.vmem [shape: f32[16,8], index: 0, kind: input, shape index: {}]
  %s1 = inlined_call_operand.vmem [shape: f32[1,128], index: 1, kind: output, shape index: {}]
  $region1: #{tile.9} parent=0
    #allocation0 [shape = 'u8[4096]{0}', space=vmem, size = 0x1000, scoped, tag = 'scoped mem for output reshape']
    %v2 = vld [vmem:[%s0] sm:$0x1]
    %vm3 = vcmask 64512
    %4 = vst.msk [vmem:[#allocation0] sm:$0x1] %vm3, %v2
    %s5 = scalar_lea.vmem %s0, 15
    %v6 = vld [vmem:[%s5] sm:$0x1]
    %7 = vrot.lane.b32.xlu0 %v6, 120
    %v8 = vpop.permute.xlu0 %7
    %vm9 = vcmask 1048512
    %10 = vst.msk [vmem:[#allocation0] sm:$0x1] %vm9, %v8
    %s11 = scalar_lea.vmem %s0, 14
    %v12 = vld [vmem:[%s11] sm:$0x1]
    %13 = vrot.lane.b32.xlu0 %v12, 112
    %v14 = vpop.permute.xlu0 %13
    %vm15 = vcmask 982912
    %16 = vst.msk [vmem:[#allocation0] sm:$0x1] %vm15, %v14
    %s17 = scalar_lea.vmem %s0, 13
    %v18 = vld [vmem:[%s17] sm:$0x1]
    %19 = vrot.lane.b32.xlu0 %v18, 104
    %v20 = vpop.permute.xlu0 %19
    %vm21 = vcmask 917312
    %22 = vst.msk [vmem:[#allocation0] sm:$0x1] %vm21, %v20
    %s23 = scalar_lea.vmem %s0, 12
    %v24 = vld [vmem:[%s23] sm:$0x1]
    %25 = vrot.lane.b32.xlu0 %v24, 96
    %v26 = vpop.permute.xlu0 %25
    %vm27 = vcmask 851712
    %28 = vst.msk [vmem:[#allocation0] sm:$0x1] %vm27, %v26
    %s29 = scalar_lea.vmem %s0, 11
    %v30 = vld [vmem:[%s29] sm:$0x1]
    %31 = vrot.lane.b32.xlu0 %v30, 88
    %v32 = vpop.permute.xlu0 %31
    %vm33 = vcmask 786112
    %34 = vst.msk [vmem:[#allocation0] sm:$0x1] %vm33, %v32
    %s35 = scalar_lea.vmem %s0, 10
    %v36 = vld [vmem:[%s35] sm:$0x1]
    %37 = vrot.lane.b32.xlu0 %v36, 80
    %v38 = vpop.permute.xlu0 %37
    %vm39 = vcmask 720512
    %40 = vst.msk [vmem:[#allocation0] sm:$0x1] %vm39, %v38
    %s41 = scalar_lea.vmem %s0, 9
    %v42 = vld [vmem:[%s41] sm:$0x1]
    %43 = vrot.lane.b32.xlu0 %v42, 72
    %v44 = vpop.permute.xlu0 %43
    %vm45 = vcmask 654912
    %46 = vst.msk [vmem:[#allocation0] sm:$0x1] %vm45, %v44
    %s47 = scalar_lea.vmem %s0, 8
    %v48 = vld [vmem:[%s47] sm:$0x1]
    %49 = vrot.lane.b32.xlu0 %v48, 64
    %v50 = vpop.permute.xlu0 %49
    %vm51 = vcmask 589312
    %52 = vst.msk [vmem:[#allocation0] sm:$0x1] %vm51, %v50
    %s53 = scalar_lea.vmem %s0, 7
    %v54 = vld [vmem:[%s53] sm:$0x1]
    %55 = vrot.lane.b32.xlu0 %v54, 56
    %v56 = vpop.permute.xlu0 %55
    %vm57 = vcmask 523712
    %58 = vst.msk [vmem:[#allocation0] sm:$0x1] %vm57, %v56
    %s59 = scalar_lea.vmem %s0, 6
    %v60 = vld [vmem:[%s59] sm:$0x1]
    %61 = vrot.lane.b32.xlu0 %v60, 48
    %v62 = vpop.permute.xlu0 %61
    %vm63 = vcmask 458112
    %64 = vst.msk [vmem:[#allocation0] sm:$0x1] %vm63, %v62
    %s65 = scalar_lea.vmem %s0, 5
    %v66 = vld [vmem:[%s65] sm:$0x1]
    %67 = vrot.lane.b32.xlu0 %v66, 40
    %v68 = vpop.permute.xlu0 %67
    %vm69 = vcmask 392512
    %70 = vst.msk [vmem:[#allocation0] sm:$0x1] %vm69, %v68
    %s71 = scalar_lea.vmem %s0, 4
    %v72 = vld [vmem:[%s71] sm:$0x1]
    %73 = vrot.lane.b32.xlu0 %v72, 32
    %v74 = vpop.permute.xlu0 %73
    %vm75 = vcmask 326912
    %76 = vst.msk [vmem:[#allocation0] sm:$0x1] %vm75, %v74
    %s77 = scalar_lea.vmem %s0, 3
    %v78 = vld [vmem:[%s77] sm:$0x1]
    %79 = vrot.lane.b32.xlu0 %v78, 24
    %v80 = vpop.permute.xlu0 %79
    %vm81 = vcmask 261312
    %82 = vst.msk [vmem:[#allocation0] sm:$0x1] %vm81, %v80
    %s83 = scalar_lea.vmem %s0, 2
    %v84 = vld [vmem:[%s83] sm:$0x1]
    %85 = vrot.lane.b32.xlu0 %v84, 16
    %v86 = vpop.permute.xlu0 %85
    %vm87 = vcmask 195712
    %88 = vst.msk [vmem:[#allocation0] sm:$0x1] %vm87, %v86
    %s89 = scalar_lea.vmem %s0, 1
    %v90 = vld [vmem:[%s89] sm:$0x1]
    %91 = vrot.lane.b32.xlu0 %v90, 8
    %v92 = vpop.permute.xlu0 %91
    %vm93 = vcmask 130112
    %94 = vst.msk [vmem:[#allocation0] sm:$0x1] %vm93, %v92
    %s96 = sshll.u32 1, 1
    %s97 = ssub.s32 %s96, 1
    %v99 = vld [vmem:[#allocation0] sm:%s97]
    %s100 = sshll.u32 1, 1
    %s101 = ssub.s32 %s100, 1
    %102 = vst [vmem:[%s1] sm:%s101] %v99

// kernel: conv_relu_pallas.1
$region0: #{conv_relu_pallas.1}
  #allocation0 [shape = 'u32[]', space=smem, size = 0x4, offset = 0x4, fixed_abs, tag = 'smem constant byte address 0x4 - core index']
  #allocation1 [shape = 'u32[144,128]{1,0:T(1,128)}', space=vmem, size = 0x12000, scoped, tag = 'internal scratch']
  %s0 = inlined_call_operand.vmem [shape: f32[2,18,64], index: 0, kind: input, shape index: {}]
  %s1 = inlined_call_operand.vmem [shape: f32[3,64,128], index: 1, kind: input, shape index: {}]
  %s2 = inlined_call_operand.vmem [shape: f32[1,128], index: 2, kind: input, shape index: {}]
  %s3 = inlined_call_operand.vmem [shape: f32[2,16,128], index: 3, kind: output, shape index: {}]
  %s4 = sld [smem:[#allocation0]]
  $region45: #{conv_relu_pallas.1} parent=0
    _
  %s6 = ssub.s32 1, %s4
  %s7 = scalar_select 0, %s6, %s4
  loop: start=0, step=1, limit=4
  $region2: #{conv_relu_pallas.1} parent=0 // loop_pre_header
    _
  $region3: #{conv_relu_pallas.1} parent=0 // loop_header
    %s9 = sphi 0, %s13
    %p10 = scmp.ge.s32.totalorder %s9, 4
    %s19 = sphi 0, %s21
    %s22 = sphi 0, %s19
    %s23 = sphi 0, %s22
    %s39 = sphi 0, %s23
    %s43 = sphi 0, %s43
    %s45 = sphi 0, %s43
    %s46 = sphi 0, %s45
    %s60 = sphi 0, %s46
    %s64 = sphi 0, %s64
    %s66 = sphi 0, %s64
    %s67 = sphi 0, %s66
    %s81 = sphi 0, %s67
    %s87 = sphi 0, %s89
    %s90 = sphi 0, %s87
    %s91 = sphi 0, %s90
    %s107 = sphi 0, %s91
  $region4: #{conv_relu_pallas.1} parent=0 // loop_header_branch
    %12 = sbr.rel (%p10) target = $region8
  $region5: #{conv_relu_pallas.1} parent=0 // loop_body
    %s14 = ssub.s32 %s9, 1
    %s15 = ssub.s32 %s9, 2
    %s16 = sadd.s32 %s9, 1
    %s17 = ssub.s32 %s9, %s16
    %p18 = scmp.eq.s32.totalorder %s17, 0
    %s20 = sadd.s32 %s19, 1
    %s21 = scalar_select %p18, %s19, %s20
    %p24 = pneg %p18
    %p25 = scmp.eq.s32.totalorder %s9, 1
    %p26 = por %p24, %p25
    %p27 = scmp.ne.s32.totalorder %s19, %s22
    %p28 = scmp.eq.s32.totalorder %s9, 0
    %p29 = por %p27, %p28
    %p30 = scmp.ne.s32.totalorder %s19, %s22
    %p31 = scmp.eq.s32.totalorder %s14, 1
    %p32 = por %p30, %p31
    %p33 = scmp.ne.s32.totalorder %s22, %s23
    %p34 = scmp.eq.s32.totalorder %s14, 0
    %p35 = por %p33, %p34
    %p36 = scmp.ne.s32.totalorder %s22, %s23
    %p37 = scmp.eq.s32.totalorder %s15, 1
    %p38 = por %p36, %p37
    %p40 = scmp.ne.s32.totalorder %s23, %s39
    %p41 = scmp.eq.s32.totalorder %s15, 0
    %p42 = por %p40, %p41
    %s44 = sadd.s32 %s43, 1
    %p47 = scmp.eq.s32.totalorder %s9, 1
    %p48 = scmp.ne.s32.totalorder %s43, %s45
    %p49 = scmp.eq.s32.totalorder %s9, 0
    %p50 = por %p48, %p49
    %p51 = scmp.ne.s32.totalorder %s43, %s45
    %p52 = scmp.eq.s32.totalorder %s14, 1
    %p53 = por %p51, %p52
    %p54 = scmp.ne.s32.totalorder %s45, %s46
    %p55 = scmp.eq.s32.totalorder %s14, 0
    %p56 = por %p54, %p55
    %p57 = scmp.ne.s32.totalorder %s45, %s46
    %p58 = scmp.eq.s32.totalorder %s15, 1
    %p59 = por %p57, %p58
    %p61 = scmp.ne.s32.totalorder %s46, %s60
    %p62 = scmp.eq.s32.totalorder %s15, 0
    %p63 = por %p61, %p62
    %s65 = sadd.s32 %s64, 1
    %p68 = scmp.eq.s32.totalorder %s9, 1
    %p69 = scmp.ne.s32.totalorder %s64, %s66
    %p70 = scmp.eq.s32.totalorder %s9, 0
    %p71 = por %p69, %p70
    %p72 = scmp.ne.s32.totalorder %s64, %s66
    %p73 = scmp.eq.s32.totalorder %s14, 1
    %p74 = por %p72, %p73
    %p75 = scmp.ne.s32.totalorder %s66, %s67
    %p76 = scmp.eq.s32.totalorder %s14, 0
    %p77 = por %p75, %p76
    %p78 = scmp.ne.s32.totalorder %s66, %s67
    %p79 = scmp.eq.s32.totalorder %s15, 1
    %p80 = por %p78, %p79
    %p82 = scmp.ne.s32.totalorder %s67, %s81
    %p83 = scmp.eq.s32.totalorder %s15, 0
    %p84 = por %p82, %p83
    %s85 = ssub.s32 %s9, %s16
    %p86 = scmp.eq.s32.totalorder %s85, 0
    %s88 = sadd.s32 %s87, 1
    %s89 = scalar_select %p86, %s87, %s88
    %p92 = pneg %p86
    %p93 = scmp.eq.s32.totalorder %s9, 1
    %p94 = por %p92, %p93
    %p95 = scmp.ne.s32.totalorder %s87, %s90
    %p96 = scmp.eq.s32.totalorder %s9, 0
    %p97 = por %p95, %p96
    %p98 = scmp.ne.s32.totalorder %s87, %s90
    %p99 = scmp.eq.s32.totalorder %s14, 1
    %p100 = por %p98, %p99
    %p101 = scmp.ne.s32.totalorder %s90, %s91
    %p102 = scmp.eq.s32.totalorder %s14, 0
    %p103 = por %p101, %p102
    %p104 = scmp.ne.s32.totalorder %s90, %s91
    %p105 = scmp.eq.s32.totalorder %s15, 1
    %p106 = por %p104, %p105
    %p108 = scmp.ne.s32.totalorder %s91, %s107
    %p109 = scmp.eq.s32.totalorder %s15, 0
    %p110 = por %p108, %p109
    %p111 = scmp.le.s32.totalorder 1, %s9
    %p112 = scmp.lt.s32.totalorder %s9, 3
    %p113 = pnand %p111, %p112
    %p114 = pneg %p113
    // Predicated region
    $region9: #{conv_relu_pallas.1} parent=5 // pred_check
      _
    $region10: #{conv_relu_pallas.1} parent=5 // pred_check_branch
      %116 = sbr.rel (%p113) target = $region12
    $region11: #{conv_relu_pallas.1} parent=5 // pred_region
      %s117 = ssub.s32 %s9, 1
      // Predicated region
      $region13: #{conv_relu_pallas.1} parent=11 // pred_check
        %p118 = pneg %p56
      $region14: #{conv_relu_pallas.1} parent=11 // pred_check_branch
        %120 = sbr.rel (%p118) target = $region16
      $region15: #{conv_relu_pallas.1} parent=11 // pred_region
        _
      $region16: #{conv_relu_pallas.1} parent=11 // pred_fallthru
        _
      // Predicated region
      $region17: #{conv_relu_pallas.1} parent=11 // pred_check
        %p121 = pneg %p77
      $region18: #{conv_relu_pallas.1} parent=11 // pred_check_branch
        %123 = sbr.rel (%p121) target = $region20
      $region19: #{conv_relu_pallas.1} parent=11 // pred_region
        _
      $region20: #{conv_relu_pallas.1} parent=11 // pred_fallthru
        _
    $region12: #{conv_relu_pallas.1} parent=5 // pred_fallthru
      _
    %p124 = scmp.lt.s32.totalorder %s9, 2
    // Predicated region
    $region21: #{conv_relu_pallas.1} parent=5 // pred_check
      %p125 = pneg %p124
    $region22: #{conv_relu_pallas.1} parent=5 // pred_check_branch
      %127 = sbr.rel (%p125) target = $region24
    $region23: #{conv_relu_pallas.1} parent=5 // pred_region
      // Predicated region
      $region25: #{conv_relu_pallas.1} parent=23 // pred_check
        %p128 = pneg %p29
      $region26: #{conv_relu_pallas.1} parent=23 // pred_check_branch
        %130 = sbr.rel (%p128) target = $region28
      $region27: #{conv_relu_pallas.1} parent=23 // pred_region
        %p131 = scmp.lt.s32.totalorder %s9, 1
        %s132 = scalar_select %p131, %s9, 1
        %s133 = smul.addr %s132, 3
        %s134 = smul.addr %s133, 8
        %s135 = scalar_lea.vmem %s0, %s134
      $region28: #{conv_relu_pallas.1} parent=23 // pred_fallthru
        _
    $region24: #{conv_relu_pallas.1} parent=5 // pred_fallthru
      _
    %p136 = scmp.le.s32.totalorder 1, %s9
    %p137 = scmp.lt.s32.totalorder %s9, 3
    %p138 = pnand %p136, %p137
    %p139 = pneg %p138
    // Predicated region
    $region29: #{conv_relu_pallas.1} parent=5 // pred_check
      _
    $region30: #{conv_relu_pallas.1} parent=5 // pred_check_branch
      %141 = sbr.rel (%p138) target = $region32
    $region31: #{conv_relu_pallas.1} parent=5 // pred_region
      %s142 = ssub.s32 %s9, 1
      %p143 = scmp.lt.s32.totalorder %s14, 1
      %s144 = scalar_select %p143, %s14, 1
      %s145 = smul.addr %s144, 3
      %s146 = smul.addr %s145, 8
      %s147 = scalar_lea.vmem %s0, %s146
      %p148 = pneg %p35
      %p149 = pneg %p32
      %p150 = pneg %p56
      %p151 = pneg %p53
      %p152 = pneg %p77
      %p153 = pneg %p74
      %p154 = pneg %p103
      %p155 = pneg %p100
      %p156 = scmp.lt.s32.totalorder %s14, 1
      %s157 = scalar_select %p156, %s14, 1
      %s158 = smul.addr %s157, 2
      %s159 = smul.addr %s158, 8
      %s160 = scalar_lea.vmem %s3, %s159
      %p161 = scmp.lt.s32.totalorder %s14, 1
      %s162 = scalar_select %p161, %s14, 1
      %s163 = smul.addr %s162, 3
      %s164 = smul.addr %s163, 8
      %s165 = scalar_lea.vmem %s0, %s164
      %p166 = scmp.lt.s32.totalorder %s14, 1
      %s167 = scalar_select %p166, %s14, 1
      %s168 = smul.addr %s167, 2
      %s169 = smul.addr %s168, 8
      %s170 = scalar_lea.vmem %s3, %s169
      %v171 = vld [vmem:[%s165] sm:$0xff]
      %v172 = vld [vmem:[%s165 + $0x8] sm:$0xff]
      %v173 = vld [vmem:[%s1] sm:$0xff]
      %v174 = vld [vmem:[%s1 + $0x8] sm:$0xff]
      %v175 = vld [vmem:[%s1 + $0x10] sm:$0xff]
      %v176 = vld [vmem:[%s1 + $0x18] sm:$0xff]
      %v177 = vld [vmem:[%s1 + $0x20] sm:$0xff]
      %v178 = vld [vmem:[%s1 + $0x28] sm:$0xff]
      %v179 = vld [vmem:[%s1 + $0x30] sm:$0xff]
      %v180 = vld [vmem:[%s1 + $0x38] sm:$0xff]
      %v181 = vld [vmem:[%s165 + $0x1] sm:$0xff]
      %v182 = vld [vmem:[%s165 + $0x9] sm:$0xff]
      %s183 = scalar_lea.vmem %s1, 64
      %v184 = vld [vmem:[%s183] sm:$0xff]
      %v185 = vld [vmem:[%s183 + $0x8] sm:$0xff]
      %v186 = vld [vmem:[%s183 + $0x10] sm:$0xff]
      %v187 = vld [vmem:[%s183 + $0x18] sm:$0xff]
      %v188 = vld [vmem:[%s183 + $0x20] sm:$0xff]
      %v189 = vld [vmem:[%s183 + $0x28] sm:$0xff]
      %v190 = vld [vmem:[%s183 + $0x30] sm:$0xff]
      %v191 = vld [vmem:[%s183 + $0x38] sm:$0xff]
      %vm192 = vcmask 523264
      %v194 = vsel %vm192, %v181, 0
      %v197 = vsel %vm192, %v182, 0
      %199 = vmatprep.subr.mxu0 0.0
      %200 = vmatpush1.msra.mxu0 0.0
      %201 = vmatprep.subr.mxu0 0.0
      %202 = vmatpush1.msra.mxu0 0.0
      %203 = vmatprep.subr.mxu0 0.0
      %204 = vmatpush1.msra.mxu0 0.0
      %205 = vmatprep.subr.mxu0 0.0
      %206 = vmatpush1.msra.mxu0 0.0
      %207 = vmatprep.subr.mxu0 0.0
      %208 = vmatpush1.msra.mxu0 0.0
      %209 = vmatprep.subr.mxu0 0.0
      %210 = vmatpush1.msra.mxu0 0.0
      %211 = vmatprep.subr.mxu0 0.0
      %212 = vmatpush1.msra.mxu0 0.0
      %213 = vmatprep.subr.mxu0 0.0
      %214 = vmatpush1.msra.mxu0 0.0
      %215 = vmatprep.subr.mxu0 0.0
      %216 = vmatpush1.msra.mxu0 %v191
      %217 = vmatprep.subr.mxu0 0.0
      %218 = vmatpush1.msra.mxu0 %v190
      %219 = vmatprep.subr.mxu0 0.0
      %220 = vmatpush1.msra.mxu0 %v189
      %221 = vmatprep.subr.mxu0 0.0
      %222 = vmatpush1.msra.mxu0 %v188
      %223 = vmatprep.subr.mxu0 0.0
      %224 = vmatpush1.msra.mxu0 %v187
      %225 = vmatprep.subr.mxu0 0.0
      %226 = vmatpush1.msra.mxu0 %v186
      %227 = vmatprep.subr.mxu0 0.0
      %228 = vmatpush1.msra.mxu0 %v185
      %229 = vmatprep.subr.mxu0 0.0
      %230 = vmatpush1.msra.mxu0 %v184
      %231 = vmatprep.subr.mxu0 0.0
      %232 = vmatpush2.msra.mxu0 0.0
      %233 = vmatprep.subr.mxu0 0.0
      %234 = vmatpush2.msra.mxu0 0.0
      %235 = vmatprep.subr.mxu0 0.0
      %236 = vmatpush2.msra.mxu0 0.0
      %237 = vmatprep.subr.mxu0 0.0
      %238 = vmatpush2.msra.mxu0 0.0
      %239 = vmatprep.subr.mxu0 0.0
      %240 = vmatpush2.msra.mxu0 0.0
      %241 = vmatprep.subr.mxu0 0.0
      %242 = vmatpush2.msra.mxu0 0.0
      %243 = vmatprep.subr.mxu0 0.0
      %244 = vmatpush2.msra.mxu0 0.0
      %245 = vmatprep.subr.mxu0 0.0
      %246 = vmatpush2.msra.mxu0 0.0
      %247 = vmatprep.subr.mxu0 0.0
      %248 = vmatpush2.msra.mxu0 0.0
      %249 = vmatprep.subr.mxu0 0.0
      %250 = vmatpush2.msra.mxu0 0.0
      %251 = vmatprep.subr.mxu0 0.0
      %252 = vmatpush2.msra.mxu0 0.0
      %253 = vmatprep.subr.mxu0 0.0
      %254 = vmatpush2.msra.mxu0 0.0
      %255 = vmatprep.subr.mxu0 0.0
      %256 = vmatpush2.msra.mxu0 0.0
      %257 = vmatprep.subr.mxu0 0.0
      %258 = vmatpush2.msra.mxu0 0.0
      %259 = vmatprep.subr.mxu0 0.0
      %260 = vmatpush2.msra.mxu0 0.0
      %261 = vmatprep.subr.mxu0 0.0
      %262 = vmatpush2.msra.mxu0 0.0
      %263 = vmatprep.mubr.f32.mxu0 0.0
      %264 = vmatmul.mubr.f32.gmra.mxu0 %v194
      %v265 = vpop.f32.mrf.mxu0
      %v266 = vadd.f32 0.0, %v265
      %v267 = vpop.f32.mrf.mxu0
      %268 = vmatprep.mubr.f32.mxu0 0.0
      %269 = vmatmul.mubr.f32.gmra.mxu0 %v197
      %v270 = vpop.f32.mrf.mxu0
      %v271 = vadd.f32 0.0, %v270
      %v272 = vpop.f32.mrf.mxu0
      %273 = vdwg.mxu0
      %v275 = vsel %vm192, %v171, 0
      %v278 = vsel %vm192, %v172, 0
      %280 = vmatprep.subr.mxu0 0.0
      %281 = vmatpush1.msra.mxu0 0.0
      %282 = vmatprep.subr.mxu0 0.0
      %283 = vmatpush1.msra.mxu0 0.0
      %284 = vmatprep.subr.mxu0 0.0
      %285 = vmatpush1.msra.mxu0 0.0
      %286 = vmatprep.subr.mxu0 0.0
      %287 = vmatpush1.msra.mxu0 0.0
      %288 = vmatprep.subr.mxu0 0.0
      %289 = vmatpush1.msra.mxu0 0.0
      %290 = vmatprep.subr.mxu0 0.0
      %291 = vmatpush1.msra.mxu0 0.0
      %292 = vmatprep.subr.mxu0 0.0
      %293 = vmatpush1.msra.mxu0 0.0
      %294 = vmatprep.subr.mxu0 0.0
      %295 = vmatpush1.msra.mxu0 0.0
      %296 = vmatprep.subr.mxu0 0.0
      %297 = vmatpush1.msra.mxu0 %v180
      %298 = vmatprep.subr.mxu0 0.0
      %299 = vmatpush1.msra.mxu0 %v179
      %300 = vmatprep.subr.mxu0 0.0
      %301 = vmatpush1.msra.mxu0 %v178
      %302 = vmatprep.subr.mxu0 0.0
      %303 = vmatpush1.msra.mxu0 %v177
      %304 = vmatprep.subr.mxu0 0.0
      %305 = vmatpush1.msra.mxu0 %v176
      %306 = vmatprep.subr.mxu0 0.0
      %307 = vmatpush1.msra.mxu0 %v175
      %308 = vmatprep.subr.mxu0 0.0
      %309 = vmatpush1.msra.mxu0 %v174
      %310 = vmatprep.subr.mxu0 0.0
      %311 = vmatpush1.msra.mxu0 %v173
      %312 = vmatprep.subr.mxu0 0.0
      %313 = vmatpush2.msra.mxu0 0.0
      %314 = vmatprep.subr.mxu0 0.0
      %315 = vmatpush2.msra.mxu0 0.0
      %316 = vmatprep.subr.mxu0 0.0
      %317 = vmatpush2.msra.mxu0 0.0
      %318 = vmatprep.subr.mxu0 0.0
      %319 = vmatpush2.msra.mxu0 0.0
      %320 = vmatprep.subr.mxu0 0.0
      %321 = vmatpush2.msra.mxu0 0.0
      %322 = vmatprep.subr.mxu0 0.0
      %323 = vmatpush2.msra.mxu0 0.0
      %324 = vmatprep.subr.mxu0 0.0
      %325 = vmatpush2.msra.mxu0 0.0
      %326 = vmatprep.subr.mxu0 0.0
      %327 = vmatpush2.msra.mxu0 0.0
      %328 = vmatprep.subr.mxu0 0.0
      %329 = vmatpush2.msra.mxu0 0.0
      %330 = vmatprep.subr.mxu0 0.0
      %331 = vmatpush2.msra.mxu0 0.0
      %332 = vmatprep.subr.mxu0 0.0
      %333 = vmatpush2.msra.mxu0 0.0
      %334 = vmatprep.subr.mxu0 0.0
      %335 = vmatpush2.msra.mxu0 0.0
      %336 = vmatprep.subr.mxu0 0.0
      %337 = vmatpush2.msra.mxu0 0.0
      %338 = vmatprep.subr.mxu0 0.0
      %339 = vmatpush2.msra.mxu0 0.0
      %340 = vmatprep.subr.mxu0 0.0
      %341 = vmatpush2.msra.mxu0 0.0
      %342 = vmatprep.subr.mxu0 0.0
      %343 = vmatpush2.msra.mxu0 0.0
      %344 = vmatprep.mubr.f32.mxu0 0.0
      %345 = vmatmul.mubr.f32.gmra.mxu0 %v275
      %v346 = vpop.f32.mrf.mxu0
      %v347 = vadd.f32 %v266, %v346
      %v348 = vpop.f32.mrf.mxu0
      %349 = vmatprep.mubr.f32.mxu0 0.0
      %350 = vmatmul.mubr.f32.gmra.mxu0 %v278
      %v351 = vpop.f32.mrf.mxu0
      %v352 = vadd.f32 %v271, %v351
      %v353 = vpop.f32.mrf.mxu0
      %354 = vdwg.mxu0
      %v355 = vld [vmem:[%s165 + $0x2] sm:$0xff]
      %v356 = vld [vmem:[%s165 + $0xa] sm:$0xff]
      %s357 = scalar_lea.vmem %s1, 128
      %v358 = vld [vmem:[%s357] sm:$0xff]
      %v359 = vld [vmem:[%s357 + $0x8] sm:$0xff]
      %v360 = vld [vmem:[%s357 + $0x10] sm:$0xff]
      %v361 = vld [vmem:[%s357 + $0x18] sm:$0xff]
      %v362 = vld [vmem:[%s357 + $0x20] sm:$0xff]
      %v363 = vld [vmem:[%s357 + $0x28] sm:$0xff]
      %v364 = vld [vmem:[%s357 + $0x30] sm:$0xff]
      %v365 = vld [vmem:[%s357 + $0x38] sm:$0xff]
      %v367 = vsel %vm192, %v355, 0
      %v370 = vsel %vm192, %v356, 0
      %372 = vmatprep.subr.mxu0 0.0
      %373 = vmatpush1.msra.mxu0 0.0
      %374 = vmatprep.subr.mxu0 0.0
      %375 = vmatpush1.msra.mxu0 0.0
      %376 = vmatprep.subr.mxu0 0.0
      %377 = vmatpush1.msra.mxu0 0.0
      %378 = vmatprep.subr.mxu0 0.0
      %379 = vmatpush1.msra.mxu0 0.0
      %380 = vmatprep.subr.mxu0 0.0
      %381 = vmatpush1.msra.mxu0 0.0
      %382 = vmatprep.subr.mxu0 0.0
      %383 = vmatpush1.msra.mxu0 0.0
      %384 = vmatprep.subr.mxu0 0.0
      %385 = vmatpush1.msra.mxu0 0.0
      %386 = vmatprep.subr.mxu0 0.0
      %387 = vmatpush1.msra.mxu0 0.0
      %388 = vmatprep.subr.mxu0 0.0
      %389 = vmatpush1.msra.mxu0 %v365
      %390 = vmatprep.subr.mxu0 0.0
      %391 = vmatpush1.msra.mxu0 %v364
      %392 = vmatprep.subr.mxu0 0.0
      %393 = vmatpush1.msra.mxu0 %v363
      %394 = vmatprep.subr.mxu0 0.0
      %395 = vmatpush1.msra.mxu0 %v362
      %396 = vmatprep.subr.mxu0 0.0
      %397 = vmatpush1.msra.mxu0 %v361
      %398 = vmatprep.subr.mxu0 0.0
      %399 = vmatpush1.msra.mxu0 %v360
      %400 = vmatprep.subr.mxu0 0.0
      %401 = vmatpush1.msra.mxu0 %v359
      %402 = vmatprep.subr.mxu0 0.0
      %403 = vmatpush1.msra.mxu0 %v358
      %404 = vmatprep.subr.mxu0 0.0
      %405 = vmatpush2.msra.mxu0 0.0
      %406 = vmatprep.subr.mxu0 0.0
      %407 = vmatpush2.msra.mxu0 0.0
      %408 = vmatprep.subr.mxu0 0.0
      %409 = vmatpush2.msra.mxu0 0.0
      %410 = vmatprep.subr.mxu0 0.0
      %411 = vmatpush2.msra.mxu0 0.0
      %412 = vmatprep.subr.mxu0 0.0
      %413 = vmatpush2.msra.mxu0 0.0
      %414 = vmatprep.subr.mxu0 0.0
      %415 = vmatpush2.msra.mxu0 0.0
      %416 = vmatprep.subr.mxu0 0.0
      %417 = vmatpush2.msra.mxu0 0.0
      %418 = vmatprep.subr.mxu0 0.0
      %419 = vmatpush2.msra.mxu0 0.0
      %420 = vmatprep.subr.mxu0 0.0
      %421 = vmatpush2.msra.mxu0 0.0
      %422 = vmatprep.subr.mxu0 0.0
      %423 = vmatpush2.msra.mxu0 0.0
      %424 = vmatprep.subr.mxu0 0.0
      %425 = vmatpush2.msra.mxu0 0.0
      %426 = vmatprep.subr.mxu0 0.0
      %427 = vmatpush2.msra.mxu0 0.0
      %428 = vmatprep.subr.mxu0 0.0
      %429 = vmatpush2.msra.mxu0 0.0
      %430 = vmatprep.subr.mxu0 0.0
      %431 = vmatpush2.msra.mxu0 0.0
      %432 = vmatprep.subr.mxu0 0.0
      %433 = vmatpush2.msra.mxu0 0.0
      %434 = vmatprep.subr.mxu0 0.0
      %435 = vmatpush2.msra.mxu0 0.0
      %436 = vmatprep.mubr.f32.mxu0 0.0
      %437 = vmatmul.mubr.f32.gmra.mxu0 %v367
      %v438 = vpop.f32.mrf.mxu0
      %v439 = vadd.f32 0.0, %v438
      %v440 = vpop.f32.mrf.mxu0
      %441 = vmatprep.mubr.f32.mxu0 0.0
      %442 = vmatmul.mubr.f32.gmra.mxu0 %v370
      %v443 = vpop.f32.mrf.mxu0
      %v444 = vadd.f32 0.0, %v443
      %v445 = vpop.f32.mrf.mxu0
      %446 = vdwg.mxu0
      %v447 = vadd.f32 %v347, %v439
      %v448 = vadd.f32 %v352, %v444
      %v449 = vld [vmem:[%s2] sm:$0x1]
      %v451 = vlaneseq
      %v452 = vshrl.u32 %v451, 7
      %v453 = vsub.s32 0, %v452
      %v454 = vrot.slane %v449, %v453
      %v456 = vadd.f32 %v447, %v454
      %v457 = vadd.f32 %v448, %v454
      %v458 = vmax.f32 %v456, 0.0
      %v459 = vmax.f32 %v457, 0.0
      %460 = vst [vmem:[%s170] sm:$0xff] %v458
      %461 = vst [vmem:[%s170 + $0x8] sm:$0xff] %v459
      %p462 = scmp.lt.s32.totalorder %s14, 1
      %s463 = scalar_select %p462, %s14, 1
      %s464 = smul.addr %s463, 2
      %s465 = smul.addr %s464, 8
      %s466 = scalar_lea.vmem %s3, %s465
      // Predicated region
      $region33: #{conv_relu_pallas.1} parent=31 // pred_check
        %p467 = pneg %p100
      $region34: #{conv_relu_pallas.1} parent=31 // pred_check_branch
        %469 = sbr.rel (%p467) target = $region36
      $region35: #{conv_relu_pallas.1} parent=31 // pred_region
        _
      $region36: #{conv_relu_pallas.1} parent=31 // pred_fallthru
        _
    $region32: #{conv_relu_pallas.1} parent=5 // pred_fallthru
      _
    %p470 = scmp.le.s32.totalorder 2, %s9
    // Predicated region
    $region37: #{conv_relu_pallas.1} parent=5 // pred_check
      %p471 = pneg %p470
    $region38: #{conv_relu_pallas.1} parent=5 // pred_check_branch
      %473 = sbr.rel (%p471) target = $region40
    $region39: #{conv_relu_pallas.1} parent=5 // pred_region
      %s474 = ssub.s32 %s9, 2
      // Predicated region
      $region41: #{conv_relu_pallas.1} parent=39 // pred_check
        %p475 = pneg %p106
      $region42: #{conv_relu_pallas.1} parent=39 // pred_check_branch
        %477 = sbr.rel (%p475) target = $region44
      $region43: #{conv_relu_pallas.1} parent=39 // pred_region
        %p478 = scmp.lt.s32.totalorder %s15, 1
        %s479 = scalar_select %p478, %s15, 1
        %s480 = smul.addr %s479, 2
        %s481 = smul.addr %s480, 8
        %s482 = scalar_lea.vmem %s3, %s481
      $region44: #{conv_relu_pallas.1} parent=39 // pred_fallthru
        _
    $region40: #{conv_relu_pallas.1} parent=5 // pred_fallthru
      _
  $region6: #{conv_relu_pallas.1} parent=0 // loop_footer
    %s13 = sadd.s32 1, %s9
  $region7: #{conv_relu_pallas.1} parent=0 // loop_footer_branch
    %8 = sbr.rel target = $region3
  $region8: #{conv_relu_pallas.1} parent=0 // loop_exit
    _

</llo_original>
